<compile_context>
chip_gen: v7x
topology: tpu7x:2x2x1
jax: 0.10.0
libtpu: 0.0.40
codegen_flags: <defaults>
</compile_context>

<pallas_src>
import functools
import math

import jax
import jax.numpy as jnp
from jax.experimental import pallas as pl
from jax.experimental.pallas import tpu as pltpu


def _packed_linear_kernel(x_ref, w_ref, b_ref, o_ref):
    # x_ref: (tile_rows, g*7)    g edges packed per row (streamed)
    # w_ref: (g*7, g*emb)        block-diagonal kron(I_g, W^T) weight (resident, tiny)
    # b_ref: (1, g*emb)          bias tiled g times (resident, tiny)
    # o_ref: (tile_rows, g*emb)  packed output, lane-dense when g*emb % 128 == 0
    acc = jnp.dot(x_ref[...], w_ref[...], preferred_element_type=jnp.float32)
    o_ref[...] = (acc + b_ref[...]).astype(o_ref.dtype)


def _round_up(x, m):
    return ((x + m - 1) // m) * m


@functools.partial(jax.jit, static_argnames=("tile_e", "out_dtype"))
def ppa_edge_encoder(edge_attr, weight, bias, *, tile_e=32768, out_dtype=None):
    """edge_attr: [E, 7]; weight: [emb_dim, 7]; bias: [emb_dim] -> [E, emb_dim].

    Matches torch.nn.Linear(7, emb_dim): y = edge_attr @ weight.T + bias.
    """
    E, F = edge_attr.shape
    emb_dim = weight.shape[0]
    assert F == 7, "PPAEdgeEncoder expects 7 input edge features"
    out_dtype = edge_attr.dtype if out_dtype is None else out_dtype
    out_itemsize = jnp.dtype(out_dtype).itemsize

    # Packing factor: fold g consecutive edges into one row so the packed output row
    # width (g*emb) is a multiple of 128 lanes.  Cap g so the resident block-diagonal
    # weight stays tiny; otherwise fall back to the natural layout (g = 1, still correct).
    g = 128 // math.gcd(emb_dim, 128)
    if g * emb_dim > 1024 or g * F > 512:
        g = 1

    # Only pad when E is not a multiple of the packing granule (the pad is what forces a
    # copy, so when we must copy anyway we align the row count to 8 sublanes as well).
    if E % g == 0:
        E_pad, x = E, edge_attr
    else:
        E_pad = _round_up(E, 8 * g)
        x = jnp.pad(edge_attr, ((0, E_pad - E), (0, 0)))

    rows = E_pad // g
    in_w = g * F
    out_w = g * emb_dim

    # Free (bitcast) reshape: [E_pad, 7] row-major == [rows, g*7] row-major.
    x_pack = x.reshape(rows, in_w)

    # Tiny packed parameters (built once per call; negligible cost).
    w_pack = jnp.kron(jnp.eye(g, dtype=weight.dtype), weight.T)   # (g*7, g*emb)
    b_pack = jnp.tile(bias, g)[None, :]                           # (1, g*emb)

    # Per-row VMEM cost (lanes pad to 128); pick the largest tile that fits a conservative
    # double-buffered budget, also bounded by the requested edges-per-step.
    in_row_bytes = _round_up(in_w, 128) * x_pack.dtype.itemsize
    out_row_bytes = _round_up(out_w, 128) * out_itemsize
    bytes_per_row_2buf = 2 * (in_row_bytes + out_row_bytes)
    vmem_budget = 24 * 1024 * 1024          # fits v5e/v6e/v7x physical VMEM comfortably
    max_rows = max(8, min(vmem_budget // bytes_per_row_2buf, max(1, tile_e // g)))

    if rows <= max_rows:
        tile_rows = rows                     # single block == full array dims
    else:
        tile_rows = _round_up(max_rows, 8)   # multiple of 8 sublanes; last block partial
    grid = (pl.cdiv(rows, tile_rows),)

    vmem_limit = int(bytes_per_row_2buf * tile_rows + (2 << 20))

    out_pack = pl.pallas_call(
        _packed_linear_kernel,
        out_shape=jax.ShapeDtypeStruct((rows, out_w), out_dtype),
        grid_spec=pltpu.PrefetchScalarGridSpec(
            num_scalar_prefetch=0,
            grid=grid,
            in_specs=[
                pl.BlockSpec((tile_rows, in_w), lambda i: (i, 0)),   # packed edges (streamed)
                pl.BlockSpec((in_w, out_w), lambda i: (0, 0)),       # weight (resident)
                pl.BlockSpec((1, out_w), lambda i: (0, 0)),          # bias (resident)
            ],
            out_specs=pl.BlockSpec((tile_rows, out_w), lambda i: (i, 0)),
        ),
        compiler_params=pltpu.CompilerParams(
            dimension_semantics=("parallel",),
            vmem_limit_bytes=vmem_limit,
        ),
        cost_estimate=pl.CostEstimate(
            flops=2 * E_pad * F * emb_dim,
            transcendentals=0,
            bytes_accessed=E_pad * F * edge_attr.dtype.itemsize
            + E_pad * emb_dim * out_itemsize
            + in_w * out_w * weight.dtype.itemsize,
        ),
    )(x_pack, w_pack, b_pack)

    # Free reshape back to natural layout; slice only when we actually padded.
    out = out_pack.reshape(E_pad, emb_dim)
    return out if E_pad == E else out[:E]


def reference(edge_attr, weight, bias):
    return edge_attr @ weight.T + bias[None, :]


if __name__ == "__main__":
    key = jax.random.PRNGKey(0)
    k_x, k_w, k_b, k_x2 = jax.random.split(key, 4)

    in_feats = 7        # fixed by the module
    emb_dim = 32        # output embedding dim

    # Deterministic parameter init (mimics nn.Linear's uniform(-1/sqrt(7), 1/sqrt(7))).
    bound = 1.0 / jnp.sqrt(jnp.float32(in_feats))
    weight = jax.random.uniform(k_w, (emb_dim, in_feats), jnp.float32, -bound, bound)
    bias = jax.random.uniform(k_b, (emb_dim,), jnp.float32, -bound, bound)

    # Case 1: ragged edge count (exercises the granule pad + output slice).
    e1 = 203
    x1 = jax.random.normal(k_x, (e1, in_feats), dtype=jnp.float32)
    o1 = jax.block_until_ready(ppa_edge_encoder(x1, weight, bias))
    r1 = reference(x1, weight, bias)
    assert o1.shape == (e1, emb_dim)
    assert jnp.allclose(o1, r1, atol=1e-5, rtol=1e-5), "mismatch vs reference (ragged E)"

    # Case 2: packing-aligned edge count (fully copy-free wrapper path).
    e2 = 256
    x2 = jax.random.normal(k_x2, (e2, in_feats), dtype=jnp.float32)
    o2 = jax.block_until_ready(ppa_edge_encoder(x2, weight, bias))
    r2 = reference(x2, weight, bias)
    assert o2.shape == (e2, emb_dim)
    assert jnp.allclose(o2, r2, atol=1e-5, rtol=1e-5), "mismatch vs reference (aligned E)"

    print("KERNEL_OK")
</pallas_src>

<mosaic_0001>
module attributes {stable_mosaic.version = 11 : i64} {
  func.func @_packed_linear_kernel(%arg0: i32, %arg1: memref<56x28xf32, #tpu.memory_space<vmem>>, %arg2: memref<28x128xf32, #tpu.memory_space<vmem>>, %arg3: memref<1x128xf32, #tpu.memory_space<vmem>>, %arg4: memref<56x128xf32, #tpu.memory_space<vmem>>) attributes {dimension_semantics = [#tpu.dimension_semantics<parallel>], iteration_bounds = array<i64: 1>, scalar_prefetch = 0 : i64, scratch_operands = 0 : i64, tpu.core_type = #tpu.core_type<tc>, window_params = [{transform_indices = @transform_0, window_bounds = array<i64: 56, 28>}, {pipeline_mode = #tpu.pipeline_mode<synchronous>, transform_indices = @transform_1, window_bounds = array<i64: 28, 128>}, {pipeline_mode = #tpu.pipeline_mode<synchronous>, transform_indices = @transform_2, window_bounds = array<i64: 1, 128>}, {transform_indices = @transform_3, window_bounds = array<i64: 56, 128>}]} {
    %c0 = arith.constant 0 : index
    %c0_0 = arith.constant 0 : index
    %0 = vector.load %arg1[%c0, %c0_0] : memref<56x28xf32, #tpu.memory_space<vmem>>, vector<56x28xf32>
    %c0_1 = arith.constant 0 : index
    %c0_2 = arith.constant 0 : index
    %1 = vector.load %arg2[%c0_1, %c0_2] : memref<28x128xf32, #tpu.memory_space<vmem>>, vector<28x128xf32>
    %cst = arith.constant dense<0.000000e+00> : vector<56x128xf32>
    %2 = tpu.matmul %0, %1, %cst {dimension_numbers = #tpu.dot_dimension_numbers<[1], [0], [0], [1], [0, 0, 1, 1], [], []>} : vector<56x28xf32>, vector<28x128xf32>, vector<56x128xf32> -> vector<56x128xf32>
    %c0_3 = arith.constant 0 : index
    %c0_4 = arith.constant 0 : index
    %3 = vector.load %arg3[%c0_3, %c0_4] : memref<1x128xf32, #tpu.memory_space<vmem>>, vector<1x128xf32>
    %4 = vector.broadcast %3 : vector<1x128xf32> to vector<56x128xf32>
    %5 = arith.addf %2, %4 : vector<56x128xf32>
    %c0_5 = arith.constant 0 : index
    %c0_6 = arith.constant 0 : index
    %6 = vector.load %arg4[%c0_5, %c0_6] : memref<56x128xf32, #tpu.memory_space<vmem>>, vector<56x128xf32>
    tpu.vector_store %arg4[%c0_5, %c0_6], %5 {strides = array<i32>} : memref<56x128xf32, #tpu.memory_space<vmem>>, vector<56x128xf32>,
    return
  }
  func.func @transform_0(%arg0: i32) -> (i32, i32) {
    %c0_i32 = arith.constant 0 : i32
    %c0_i32_0 = arith.constant 0 : i32
    return %arg0, %c0_i32 : i32, i32
  }
  func.func @transform_1(%arg0: i32) -> (i32, i32) {
    %c0_i32 = arith.constant 0 : i32
    %c0_i32_0 = arith.constant 0 : i32
    %c0_i32_1 = arith.constant 0 : i32
    return %c0_i32, %c0_i32_0 : i32, i32
  }
  func.func @transform_2(%arg0: i32) -> (i32, i32) {
    %c0_i32 = arith.constant 0 : i32
    %c0_i32_0 = arith.constant 0 : i32
    %c0_i32_1 = arith.constant 0 : i32
    return %c0_i32, %c0_i32_0 : i32, i32
  }
  func.func @transform_3(%arg0: i32) -> (i32, i32) {
    %c0_i32 = arith.constant 0 : i32
    %c0_i32_0 = arith.constant 0 : i32
    return %arg0, %c0_i32 : i32, i32
  }
}

</mosaic_0001>

<llo_original>
// kernel: tile.8
$region0: #{tile.8}
  #allocation0 [shape = 's32[1]{0}', space=sflag, size = 0x4, scoped, tag = 'scoped memory for tile.8']
  %s0 = inlined_call_operand.vmem [shape: f32[32], index: 0, kind: input, shape index: {}]
  %s1 = inlined_call_operand.vmem [shape: f32[4,32], index: 1, kind: output, shape index: {}]
  // Predicated region
  $region2: #{tile.8} parent=0 // pred_check
    _
  $region3: #{tile.8} parent=0 // pred_check_branch
    %3 = sbr.rel (0) target = $region5
  $region4: #{tile.8} parent=0 // pred_region
    _
  $region5: #{tile.8} parent=0 // pred_fallthru
    _
  %v4 = vld [vmem:[%s0] ss:$0 sm:$0xff]
  %5 = vst [vmem:[%s1] sm:$0xf] %v4

// kernel: tile.9
$region0: #{tile.9}
  %s0 = inlined_call_operand.vmem [shape: f32[4,32], index: 0, kind: input, shape index: {}]
  %s1 = inlined_call_operand.vmem [shape: f32[1,128], index: 1, kind: output, shape index: {}]
  $region1: #{tile.9} parent=0
    #allocation0 [shape = 'u8[4096]{0}', space=vmem, size = 0x1000, scoped, tag = 'scoped mem for output reshape']
    #allocation1 [shape = 'u8[4096]{0}', space=vmem, size = 0x1000, scoped, tag = 'scoped mem for input reshape']
    %s3 = sshllo.u32 0, 4
    %v4 = vld [vmem:[%s0] sm:%s3]
    %5 = vst [vmem:[#allocation1] sm:%s3] %v4
    %v6 = vld [vmem:[#allocation1] sm:$0x1]
    %vm7 = vcmask 261120
    %8 = vst.msk [vmem:[#allocation0] sm:$0x1] %vm7, %v6
    %s9 = scalar_lea.vmem [#allocation1], 3
    %v10 = vld [vmem:[%s9] sm:$0x1]
    %11 = vrot.lane.b32.xlu0 %v10, 96
    %v12 = vpop.permute.xlu0 %11
    %vm13 = vcmask 1048320
    %14 = vst.msk [vmem:[#allocation0] sm:$0x1] %vm13, %v12
    %s15 = scalar_lea.vmem [#allocation1], 2
    %v16 = vld [vmem:[%s15] sm:$0x1]
    %17 = vrot.lane.b32.xlu0 %v16, 64
    %v18 = vpop.permute.xlu0 %17
    %vm19 = vcmask 785920
    %20 = vst.msk [vmem:[#allocation0] sm:$0x1] %vm19, %v18
    %s21 = scalar_lea.vmem [#allocation1], 1
    %v22 = vld [vmem:[%s21] sm:$0x1]
    %23 = vrot.lane.b32.xlu0 %v22, 32
    %v24 = vpop.permute.xlu0 %23
    %vm25 = vcmask 523520
    %26 = vst.msk [vmem:[#allocation0] sm:$0x1] %vm25, %v24
    %s28 = sshllo.u32 0, 1
    %v30 = vld [vmem:[#allocation0] sm:%s28]
    %s31 = sshllo.u32 0, 1
    %32 = vst [vmem:[%s1] sm:%s31] %v30

// kernel: ppa_edge_encoder.1
$region0: #{ppa_edge_encoder.1}
  #allocation0 [shape = 'u32[]', space=smem, size = 0x4, offset = 0x4, fixed_abs, tag = 'smem constant byte address 0x4 - core index']
  #allocation1 [shape = 'u32[144,128]{1,0:T(1,128)}', space=vmem, size = 0x12000, scoped, tag = 'internal scratch']
  %s0 = inlined_call_operand.vmem [shape: f32[56,28], index: 0, kind: input, shape index: {}]
  %s1 = inlined_call_operand.vmem [shape: f32[28,128], index: 1, kind: input, shape index: {}]
  %s2 = inlined_call_operand.vmem [shape: f32[1,128], index: 2, kind: input, shape index: {}]
  %s3 = inlined_call_operand.vmem [shape: f32[56,128], index: 3, kind: output, shape index: {}]
  %s4 = sld [smem:[#allocation0]]
  $region22: #{ppa_edge_encoder.1} parent=0
    _
  %s6 = ssub.s32 1, %s4
  %s7 = scalar_select 0, %s6, %s4
  // Predicated region
  $region2: #{ppa_edge_encoder.1} parent=0 // pred_check
    _
  $region3: #{ppa_edge_encoder.1} parent=0 // pred_check_branch
    %9 = sbr.rel (0) target = $region5
  $region4: #{ppa_edge_encoder.1} parent=0 // pred_region
    _
  $region5: #{ppa_edge_encoder.1} parent=0 // pred_fallthru
    _
  // Predicated region
  $region6: #{ppa_edge_encoder.1} parent=0 // pred_check
    _
  $region7: #{ppa_edge_encoder.1} parent=0 // pred_check_branch
    %11 = sbr.rel (0) target = $region9
  $region8: #{ppa_edge_encoder.1} parent=0 // pred_region
    _
  $region9: #{ppa_edge_encoder.1} parent=0 // pred_fallthru
    _
  // Predicated region
  $region10: #{ppa_edge_encoder.1} parent=0 // pred_check
    _
  $region11: #{ppa_edge_encoder.1} parent=0 // pred_check_branch
    %13 = sbr.rel (0) target = $region13
  $region12: #{ppa_edge_encoder.1} parent=0 // pred_region
    _
  $region13: #{ppa_edge_encoder.1} parent=0 // pred_fallthru
    _
  %v14 = vld [vmem:[%s0] sm:$0xff]
  %v15 = vld [vmem:[%s0 + $0x8] sm:$0xff]
  %v16 = vld [vmem:[%s0 + $0x10] sm:$0xff]
  %v17 = vld [vmem:[%s0 + $0x18] sm:$0xff]
  %v18 = vld [vmem:[%s0 + $0x20] sm:$0xff]
  %v19 = vld [vmem:[%s0 + $0x28] sm:$0xff]
  %v20 = vld [vmem:[%s0 + $0x30] sm:$0xff]
  %v21 = vld [vmem:[%s1] sm:$0xff]
  %v22 = vld [vmem:[%s1 + $0x8] sm:$0xff]
  %v23 = vld [vmem:[%s1 + $0x10] sm:$0xff]
  %v24 = vld [vmem:[%s1 + $0x18] sm:$0xf]
  %v25 = vld [vmem:[%s2] sm:$0x1]
  %v27 = vlaneseq
  %v28 = vshrl.u32 %v27, 7
  %v29 = vsub.s32 0, %v28
  %v30 = vrot.slane %v25, %v29
  %vm32 = vcmask 228352
  %v34 = vsel %vm32, %v14, 0
  %v37 = vsel %vm32, %v15, 0
  %v40 = vsel %vm32, %v16, 0
  %v43 = vsel %vm32, %v17, 0
  %v46 = vsel %vm32, %v18, 0
  %v49 = vsel %vm32, %v19, 0
  %v52 = vsel %vm32, %v20, 0
  %vm54 = vcmask 1043456
  %v56 = vsel %vm54, %v24, 0
  %58 = vmatprep.subr.mxu0 0.0
  %59 = vmatpush1.msra.mxu0 %v21
  %60 = vmatprep.subr.mxu0 0.0
  %61 = vmatpush1.msra.mxu0 %v22
  %62 = vmatprep.subr.mxu0 0.0
  %63 = vmatpush1.msra.mxu0 %v23
  %64 = vmatprep.subr.mxu0 0.0
  %65 = vmatpush1.msra.mxu0 %v56
  %66 = vmatprep.subr.mxu0 0.0
  %67 = vmatpush1.msra.mxu0 0.0
  %68 = vmatprep.subr.mxu0 0.0
  %69 = vmatpush1.msra.mxu0 0.0
  %70 = vmatprep.subr.mxu0 0.0
  %71 = vmatpush1.msra.mxu0 0.0
  %72 = vmatprep.subr.mxu0 0.0
  %73 = vmatpush1.msra.mxu0 0.0
  %74 = vmatprep.subr.mxu0 0.0
  %75 = vmatpush1.msra.mxu0 0.0
  %76 = vmatprep.subr.mxu0 0.0
  %77 = vmatpush1.msra.mxu0 0.0
  %78 = vmatprep.subr.mxu0 0.0
  %79 = vmatpush1.msra.mxu0 0.0
  %80 = vmatprep.subr.mxu0 0.0
  %81 = vmatpush1.msra.mxu0 0.0
  %82 = vmatprep.subr.mxu0 0.0
  %83 = vmatpush1.msra.mxu0 0.0
  %84 = vmatprep.subr.mxu0 0.0
  %85 = vmatpush1.msra.mxu0 0.0
  %86 = vmatprep.subr.mxu0 0.0
  %87 = vmatpush1.msra.mxu0 0.0
  %88 = vmatprep.subr.mxu0 0.0
  %89 = vmatpush1.msra.mxu0 0.0
  %90 = vmatprep.subr.mxu0 0.0
  %91 = vmatpush1.msra.mxu0 0.0
  %92 = vmatprep.subr.mxu0 0.0
  %93 = vmatpush1.msra.mxu0 0.0
  %94 = vmatprep.subr.mxu0 0.0
  %95 = vmatpush1.msra.mxu0 0.0
  %96 = vmatprep.subr.mxu0 0.0
  %97 = vmatpush1.msra.mxu0 0.0
  %98 = vmatprep.subr.mxu0 0.0
  %99 = vmatpush1.msra.mxu0 0.0
  %100 = vmatprep.subr.mxu0 0.0
  %101 = vmatpush1.msra.mxu0 0.0
  %102 = vmatprep.subr.mxu0 0.0
  %103 = vmatpush1.msra.mxu0 0.0
  %104 = vmatprep.subr.mxu0 0.0
  %105 = vmatpush1.msra.mxu0 0.0
  %106 = vmatprep.subr.mxu0 0.0
  %107 = vmatpush1.msra.mxu0 0.0
  %108 = vmatprep.subr.mxu0 0.0
  %109 = vmatpush1.msra.mxu0 0.0
  %110 = vmatprep.subr.mxu0 0.0
  %111 = vmatpush1.msra.mxu0 0.0
  %112 = vmatprep.subr.mxu0 0.0
  %113 = vmatpush1.msra.mxu0 0.0
  %114 = vmatprep.subr.mxu0 0.0
  %115 = vmatpush1.msra.mxu0 0.0
  %116 = vmatprep.subr.mxu0 0.0
  %117 = vmatpush1.msra.mxu0 0.0
  %118 = vmatprep.subr.mxu0 0.0
  %119 = vmatpush1.msra.mxu0 0.0
  %120 = vmatprep.subr.mxu0 0.0
  %121 = vmatpush1.msra.mxu0 0.0
  %122 = vmatprep.mubr.f32.mxu0 0.0
  %123 = vmatmul.mubr.f32.gmra.mrb[0].mxu0 %v34
  %v124 = vpop.f32.mrb[0].mxu0
  %v125 = vadd.f32 %v30, %v124
  %v126 = vpop.f32.mrb[0].mxu0
  %127 = vmatprep.mubr.f32.mxu0 0.0
  %128 = vmatmul.mubr.f32.gmra.mrb[0].mxu0 %v37
  %v129 = vpop.f32.mrb[0].mxu0
  %v130 = vadd.f32 %v30, %v129
  %v131 = vpop.f32.mrb[0].mxu0
  %132 = vmatprep.mubr.f32.mxu0 0.0
  %133 = vmatmul.mubr.f32.gmra.mrb[0].mxu0 %v40
  %v134 = vpop.f32.mrb[0].mxu0
  %v135 = vadd.f32 %v30, %v134
  %v136 = vpop.f32.mrb[0].mxu0
  %137 = vmatprep.mubr.f32.mxu0 0.0
  %138 = vmatmul.mubr.f32.gmra.mrb[0].mxu0 %v43
  %v139 = vpop.f32.mrb[0].mxu0
  %v140 = vadd.f32 %v30, %v139
  %v141 = vpop.f32.mrb[0].mxu0
  %142 = vmatprep.mubr.f32.mxu0 0.0
  %143 = vmatmul.mubr.f32.gmra.mrb[0].mxu0 %v46
  %v144 = vpop.f32.mrb[0].mxu0
  %v145 = vadd.f32 %v30, %v144
  %v146 = vpop.f32.mrb[0].mxu0
  %147 = vmatprep.mubr.f32.mxu0 0.0
  %148 = vmatmul.mubr.f32.gmra.mrb[0].mxu0 %v49
  %v149 = vpop.f32.mrb[0].mxu0
  %v150 = vadd.f32 %v30, %v149
  %v151 = vpop.f32.mrb[0].mxu0
  %152 = vmatprep.mubr.f32.mxu0 0.0
  %153 = vmatmul.mubr.f32.gmra.mrb[0].mxu0 %v52
  %v154 = vpop.f32.mrb[0].mxu0
  %v155 = vadd.f32 %v30, %v154
  %v156 = vpop.f32.mrb[0].mxu0
  %157 = vdwg.mxu0
  %158 = vst [vmem:[%s3] sm:$0xff] %v125
  %159 = vst [vmem:[%s3 + $0x8] sm:$0xff] %v130
  %160 = vst [vmem:[%s3 + $0x10] sm:$0xff] %v135
  %161 = vst [vmem:[%s3 + $0x18] sm:$0xff] %v140
  %162 = vst [vmem:[%s3 + $0x20] sm:$0xff] %v145
  %163 = vst [vmem:[%s3 + $0x28] sm:$0xff] %v150
  %164 = vst [vmem:[%s3 + $0x30] sm:$0xff] %v155
  // Predicated region
  $region14: #{ppa_edge_encoder.1} parent=0 // pred_check
    _
  $region15: #{ppa_edge_encoder.1} parent=0 // pred_check_branch
    %166 = sbr.rel (0) target = $region17
  $region16: #{ppa_edge_encoder.1} parent=0 // pred_region
    _
  $region17: #{ppa_edge_encoder.1} parent=0 // pred_fallthru
    _
  // Predicated region
  $region18: #{ppa_edge_encoder.1} parent=0 // pred_check
    _
  $region19: #{ppa_edge_encoder.1} parent=0 // pred_check_branch
    %168 = sbr.rel (0) target = $region21
  $region20: #{ppa_edge_encoder.1} parent=0 // pred_region
    _
  $region21: #{ppa_edge_encoder.1} parent=0 // pred_fallthru
    _

</llo_original>
